<compile_context>
chip_gen: v6e
topology: v6e:2x2x1
jax: 0.10.0
libtpu: 0.0.40
codegen_flags: <defaults>
</compile_context>

<pallas_src>
import numpy as np
import jax
import jax.numpy as jnp
from jax.experimental import pallas as pl
from jax.experimental.pallas import tpu as pltpu

# ----------------------------- problem constants -----------------------------
TPS_GRID = 3                      # TpsGridGen default control grid
N_CTRL = TPS_GRID * TPS_GRID      # 9 control points -> theta_tps has 18 entries
EVAL_GRID = 20                    # TransformedGridLoss grid_size
N_EVAL = EVAL_GRID * EVAL_GRID    # 400 evaluation points

# padded / packed (TPU-aligned) sizes
KC = 16                           # padded coefficient dim: 9 real + 1 const row + 6 zero
PACK_W = 128                      # lane-dense packed per-batch input width
COL_QXP = 0 * KC                  # packed column layout
COL_QYP = 1 * KC
COL_QXG = 2 * KC                  # col COL_QXG + N_CTRL holds -a2
COL_QYG = 3 * KC                  # col COL_QYG + N_CTRL holds -a5
COL_AFF = 4 * KC                  # a0, a1, a3, a4 at lanes 64..67
MAX_BB = 2048                     # batch rows per grid step (safe for v5e's 16 MiB
                                  # default scoped VMEM; ~4-5 MiB/step incl. buffers)


# ----------------------------- host-side constant folding -----------------------------
def _build_constants():
    """Fold control points, L^{-1}, the fixed eval grid AND the sum over the 400
    eval points into one 16x16 Gram matrix G (built in float64).

    With E_aug[10, 400] such that  diff_x(n) = dx_coeffs @ E_aug[:, n]
    (rows 0..8: TPS eval matrix, row 9: constant row carrying the affine
    translation), we have  sum_n diff_x(n)^2 = dx_coeffs @ G @ dx_coeffs^T,
    G = E_aug @ E_aug^T.  Same G for the y coordinate.
    """
    # control points, exactly as TpsGridGen (note the (P_Y, P_X) meshgrid order)
    axis_c = np.linspace(-1.0, 1.0, TPS_GRID)
    p_y, p_x = np.meshgrid(axis_c, axis_c)
    px = p_x.reshape(-1).astype(np.float64)            # [-1,-1,-1, 0,0,0, 1,1,1]
    py = p_y.reshape(-1).astype(np.float64)            # [-1, 0, 1,-1,0,1,-1,0,1]

    # L^{-1}, exactly as TpsGridGen.compute_L_inverse
    d2 = (px[:, None] - px[None, :]) ** 2 + (py[:, None] - py[None, :]) ** 2
    d2[d2 == 0.0] = 1.0
    K = d2 * np.log(d2)
    Pm = np.concatenate([np.ones((N_CTRL, 1)), px[:, None], py[:, None]], axis=1)
    L = np.zeros((N_CTRL + 3, N_CTRL + 3), dtype=np.float64)
    L[:N_CTRL, :N_CTRL] = K
    L[:N_CTRL, N_CTRL:] = Pm
    L[N_CTRL:, :N_CTRL] = Pm.T
    # TODO(synk): torch.inverse of the tiny constant 12x12 L matrix is done here on
    # host (numpy) and folded into G rather than computed inside the kernel.
    Li = np.linalg.inv(L)

    # fixed 20x20 evaluation grid (same flattening as np.meshgrid + reshape)
    axis_e = np.linspace(-1.0, 1.0, EVAL_GRID)
    Xg, Yg = np.meshgrid(axis_e, axis_e)
    xe = Xg.reshape(-1).astype(np.float64)
    ye = Yg.reshape(-1).astype(np.float64)

    # TPS radial kernel U[i, n] = r^2 log r^2 (with the dist==0 -> 1 guard)
    dxm = xe[None, :] - px[:, None]
    dym = ye[None, :] - py[:, None]
    r2 = dxm * dxm + dym * dym
    r2[r2 == 0.0] = 1.0                                 # corners coincide with ctrl pts
    U = r2 * np.log(r2)                                 # [9, 400]
    V = np.stack([np.ones(N_EVAL), xe, ye], axis=0)     # [3, 400]

    E = Li[:N_CTRL, :N_CTRL].T @ U + Li[N_CTRL:, :N_CTRL].T @ V   # [9, 400]
    E_aug = np.concatenate([E, np.ones((1, N_EVAL))], axis=0)     # [10, 400]

    G = E_aug @ E_aug.T                                 # [10, 10] float64 Gram
    G_pad = np.zeros((KC, KC), np.float32)
    G_pad[:N_CTRL + 1, :N_CTRL + 1] = G.astype(np.float32)

    return (px.astype(np.float32), py.astype(np.float32), Li.astype(np.float32),
            xe.astype(np.float32), ye.astype(np.float32), G_pad)


_PX_CTRL, _PY_CTRL, _LI, _XE, _YE, _G_PAD = _build_constants()


# ----------------------------- Pallas kernel -----------------------------
def _grid_loss_kernel(g_ref, pk_ref, out_ref):
    """One batch tile: partial sum over points of squared coordinate error.

    g_ref   : [KC, KC]     folded Gram matrix G = E_aug @ E_aug^T (constant, resident)
    pk_ref  : [BB, 128]    packed per-batch inputs (qxp|qyp|qxg|qyg|a0 a1 a3 a4)
    out_ref : [1, 8, 128]  per-tile partial sum, broadcast over the block (lane-dense)
    """
    pk = pk_ref[...]                                    # [BB, 128]
    qxp = pk[:, COL_QXP:COL_QXP + KC]                   # pred TPS x coeffs (9 real)
    qyp = pk[:, COL_QYP:COL_QYP + KC]                   # pred TPS y coeffs
    qxg = pk[:, COL_QXG:COL_QXG + KC]                   # GT x coeffs, col 9 = -a2
    qyg = pk[:, COL_QYG:COL_QYG + KC]                   # GT y coeffs, col 9 = -a5
    a0 = pk[:, COL_AFF + 0:COL_AFF + 1]
    a1 = pk[:, COL_AFF + 1:COL_AFF + 2]
    a3 = pk[:, COL_AFF + 2:COL_AFF + 3]
    a4 = pk[:, COL_AFF + 3:COL_AFF + 4]

    # coefficient-space difference (prediction - ground truth); column N_CTRL picks
    # up the affine translation a2 / a5 via the -a2 / -a5 folded into qxg / qyg.
    dx = a0 * qxp + a1 * qyp - qxg                      # [BB, KC]
    dy = a3 * qxp + a4 * qyp - qyg                      # [BB, KC]
    lhs = jnp.concatenate([dx, dy], axis=0)             # [2*BB, KC]

    # sum over the 400 eval points via the quadratic form with the Gram matrix:
    # sum_n (lhs @ E_aug[:, n])^2 == sum((lhs @ G) * lhs)
    t = jnp.dot(lhs, g_ref[...], preferred_element_type=jnp.float32)   # [2*BB, KC]
    s = t * lhs                                         # zero on all padding rows/cols
    col = jnp.sum(s, axis=0, keepdims=True)             # [1, KC]  sublane reduce first
    partial = jnp.sum(col, axis=1, keepdims=True)       # [1, 1]   tiny 16-lane reduce

    # lane-dense unmasked store of this tile's partial (read back at [i, 0, 0])
    out_ref[...] = jnp.broadcast_to(partial, (1, 8, 128))


# ----------------------------- wrapper -----------------------------
def _round_up(x, m):
    return ((x + m - 1) // m) * m


def transformed_grid_loss(theta_aff_tps, theta_aff, theta_gt, *, max_rows_per_step=MAX_BB):
    """Pallas implementation of TransformedGridLoss.forward (returns scalar f32)."""
    batch = theta_aff_tps.shape[0]
    assert theta_aff_tps.shape == (batch, 2 * N_CTRL)
    assert theta_aff.shape == (batch, 6)
    assert theta_gt.shape == (batch, 2 * N_CTRL)
    assert batch >= 1

    theta_aff_tps = jnp.asarray(theta_aff_tps, jnp.float32)
    theta_aff = jnp.asarray(theta_aff, jnp.float32)
    theta_gt = jnp.asarray(theta_gt, jnp.float32)

    bb = min(_round_up(max_rows_per_step, 8), _round_up(batch, 8))   # rows per step
    g = pl.cdiv(batch, bb)                                           # grid size (int)
    bp = g * bb                                                      # padded batch

    # pack everything the kernel needs into one lane-dense [bp, 128] array
    packed = jnp.zeros((bp, PACK_W), jnp.float32)
    packed = packed.at[:batch, COL_QXP:COL_QXP + N_CTRL].set(theta_aff_tps[:, :N_CTRL])
    packed = packed.at[:batch, COL_QYP:COL_QYP + N_CTRL].set(theta_aff_tps[:, N_CTRL:])
    packed = packed.at[:batch, COL_QXG:COL_QXG + N_CTRL].set(theta_gt[:, :N_CTRL])
    packed = packed.at[:batch, COL_QYG:COL_QYG + N_CTRL].set(theta_gt[:, N_CTRL:])
    # fold the affine translation into the GT "constant" column (dx = ... - qxg -> +a2)
    packed = packed.at[:batch, COL_QXG + N_CTRL].set(-theta_aff[:, 2])
    packed = packed.at[:batch, COL_QYG + N_CTRL].set(-theta_aff[:, 5])
    packed = packed.at[:batch, COL_AFF + 0].set(theta_aff[:, 0])
    packed = packed.at[:batch, COL_AFF + 1].set(theta_aff[:, 1])
    packed = packed.at[:batch, COL_AFF + 2].set(theta_aff[:, 3])
    packed = packed.at[:batch, COL_AFF + 3].set(theta_aff[:, 4])

    partials = pl.pallas_call(
        _grid_loss_kernel,
        out_shape=jax.ShapeDtypeStruct((g, 8, 128), jnp.float32),
        grid=(g,),
        in_specs=[
            pl.BlockSpec((KC, KC), lambda i: (0, 0)),        # G (constant, resident)
            pl.BlockSpec((bb, PACK_W), lambda i: (i, 0)),    # packed per-batch inputs
        ],
        out_specs=pl.BlockSpec((1, 8, 128), lambda i: (i, 0, 0)),
        # each step writes its own partial block -> batch axis is truly parallel
        # (both TensorCores on v7x; also avoids a long f32 accumulation chain)
        compiler_params=pltpu.CompilerParams(dimension_semantics=("parallel",)),
    )(jnp.asarray(_G_PAD), packed)

    total = jnp.sum(partials[:, 0, 0])
    return total / jnp.float32(batch * N_EVAL)


# ----------------------------- pure-JAX reference (verification) -----------------------------
def _ref_tps_point_tnf(theta, points):
    px = jnp.asarray(_PX_CTRL)
    py = jnp.asarray(_PY_CTRL)
    li = jnp.asarray(_LI)
    qx = theta[:, :N_CTRL]
    qy = theta[:, N_CTRL:]
    liw = li[:N_CTRL, :N_CTRL]
    lia = li[N_CTRL:, :N_CTRL]
    wx = qx @ liw.T
    wy = qy @ liw.T
    ax = qx @ lia.T
    ay = qy @ lia.T
    x = points[:, 0, :]
    y = points[:, 1, :]
    dx = x[:, :, None] - px[None, None, :]
    dy = y[:, :, None] - py[None, None, :]
    d2 = dx * dx + dy * dy
    d2 = jnp.where(d2 == 0.0, 1.0, d2)
    u = d2 * jnp.log(d2)
    xp = ax[:, 0:1] + ax[:, 1:2] * x + ax[:, 2:3] * y + jnp.einsum("bni,bi->bn", u, wx)
    yp = ay[:, 0:1] + ay[:, 1:2] * x + ay[:, 2:3] * y + jnp.einsum("bni,bi->bn", u, wy)
    return jnp.stack([xp, yp], axis=1)


def _ref_aff_point_tnf(theta, points):
    m = theta.reshape(-1, 2, 3)
    return jnp.einsum("bij,bjn->bin", m[:, :, :2], points) + m[:, :, 2][:, :, None]


def reference_loss(theta_aff_tps, theta_aff, theta_gt):
    batch = theta_aff_tps.shape[0]
    P = jnp.stack([jnp.asarray(_XE), jnp.asarray(_YE)], axis=0)          # [2, 400]
    P = jnp.broadcast_to(P[None], (batch, 2, N_EVAL))
    p_prime = _ref_tps_point_tnf(theta_aff_tps, P)
    p_prime = _ref_aff_point_tnf(theta_aff, p_prime)
    p_gt = _ref_tps_point_tnf(theta_gt, P)
    loss = jnp.sum((p_prime - p_gt) ** 2, axis=1)
    return jnp.mean(loss)


# ----------------------------- demo -----------------------------
if __name__ == "__main__":
    key = jax.random.PRNGKey(0)

    # identity-like parameters + small deterministic noise
    ident_tps = jnp.concatenate([jnp.asarray(_PX_CTRL), jnp.asarray(_PY_CTRL)])  # [18]
    ident_aff = jnp.array([1.0, 0.0, 0.0, 0.0, 1.0, 0.0], jnp.float32)           # [6]

    def make_inputs(k, b):
        k1, k2, k3 = jax.random.split(k, 3)
        t_tps = ident_tps[None, :] + 0.1 * jax.random.normal(k1, (b, 2 * N_CTRL), jnp.float32)
        t_aff = ident_aff[None, :] + 0.1 * jax.random.normal(k2, (b, 6), jnp.float32)
        t_gt = ident_tps[None, :] + 0.1 * jax.random.normal(k3, (b, 2 * N_CTRL), jnp.float32)
        return t_tps, t_aff, t_gt

    k_a, k_b = jax.random.split(key)

    # small batch (single grid step)
    a_tps, a_aff, a_gt = make_inputs(k_a, 2)
    loss_a = jax.block_until_ready(transformed_grid_loss(a_tps, a_aff, a_gt))
    ref_a = reference_loss(a_tps, a_aff, a_gt)
    np.testing.assert_allclose(float(loss_a), float(ref_a), rtol=2e-3, atol=1e-4)

    # multi-tile path: 3 grid steps, batch not a multiple of the tile (padding path)
    b_tps, b_aff, b_gt = make_inputs(k_b, 20)
    loss_b = jax.block_until_ready(
        transformed_grid_loss(b_tps, b_aff, b_gt, max_rows_per_step=8))
    ref_b = reference_loss(b_tps, b_aff, b_gt)
    np.testing.assert_allclose(float(loss_b), float(ref_b), rtol=2e-3, atol=1e-4)

    print("KERNEL_OK")
</pallas_src>

<mosaic_0001>
module attributes {stable_mosaic.version = 11 : i64} {
  func.func @_grid_loss_kernel(%arg0: i32, %arg1: memref<16x16xf32, #tpu.memory_space<vmem>>, %arg2: memref<8x128xf32, #tpu.memory_space<vmem>>, %arg3: memref<1x8x128xf32, #tpu.memory_space<vmem>>) attributes {dimension_semantics = [#tpu.dimension_semantics<parallel>], iteration_bounds = array<i64: 1>, scalar_prefetch = 0 : i64, scratch_operands = 0 : i64, tpu.core_type = #tpu.core_type<tc>, window_params = [{pipeline_mode = #tpu.pipeline_mode<synchronous>, transform_indices = @transform_0, window_bounds = array<i64: 16, 16>}, {transform_indices = @transform_1, window_bounds = array<i64: 8, 128>}, {transform_indices = @transform_2, window_bounds = array<i64: 1, 8, 128>}]} {
    %c0 = arith.constant 0 : index
    %c0_0 = arith.constant 0 : index
    %0 = vector.load %arg2[%c0, %c0_0] : memref<8x128xf32, #tpu.memory_space<vmem>>, vector<8x128xf32>
    %1 = vector.extract_strided_slice %0 {offsets = [0, 0], sizes = [8, 16], strides = [1, 1]} : vector<8x128xf32> to vector<8x16xf32>
    %2 = vector.extract_strided_slice %0 {offsets = [0, 16], sizes = [8, 16], strides = [1, 1]} : vector<8x128xf32> to vector<8x16xf32>
    %3 = vector.extract_strided_slice %0 {offsets = [0, 32], sizes = [8, 16], strides = [1, 1]} : vector<8x128xf32> to vector<8x16xf32>
    %4 = vector.extract_strided_slice %0 {offsets = [0, 48], sizes = [8, 16], strides = [1, 1]} : vector<8x128xf32> to vector<8x16xf32>
    %5 = vector.extract_strided_slice %0 {offsets = [0, 64], sizes = [8, 1], strides = [1, 1]} : vector<8x128xf32> to vector<8x1xf32>
    %6 = vector.extract_strided_slice %0 {offsets = [0, 65], sizes = [8, 1], strides = [1, 1]} : vector<8x128xf32> to vector<8x1xf32>
    %7 = vector.extract_strided_slice %0 {offsets = [0, 66], sizes = [8, 1], strides = [1, 1]} : vector<8x128xf32> to vector<8x1xf32>
    %8 = vector.extract_strided_slice %0 {offsets = [0, 67], sizes = [8, 1], strides = [1, 1]} : vector<8x128xf32> to vector<8x1xf32>
    %9 = vector.broadcast %5 : vector<8x1xf32> to vector<8x16xf32>
    %10 = arith.mulf %9, %1 : vector<8x16xf32>
    %11 = vector.broadcast %6 : vector<8x1xf32> to vector<8x16xf32>
    %12 = arith.mulf %11, %2 : vector<8x16xf32>
    %13 = arith.addf %10, %12 : vector<8x16xf32>
    %14 = arith.subf %13, %3 : vector<8x16xf32>
    %15 = vector.broadcast %7 : vector<8x1xf32> to vector<8x16xf32>
    %16 = arith.mulf %15, %1 : vector<8x16xf32>
    %17 = vector.broadcast %8 : vector<8x1xf32> to vector<8x16xf32>
    %18 = arith.mulf %17, %2 : vector<8x16xf32>
    %19 = arith.addf %16, %18 : vector<8x16xf32>
    %20 = arith.subf %19, %4 : vector<8x16xf32>
    %21 = tpu.concatenate %14, %20 in 0 : vector<8x16xf32>, vector<8x16xf32> -> vector<16x16xf32>
    %c0_1 = arith.constant 0 : index
    %c0_2 = arith.constant 0 : index
    %22 = vector.load %arg1[%c0_1, %c0_2] : memref<16x16xf32, #tpu.memory_space<vmem>>, vector<16x16xf32>
    %cst = arith.constant dense<0.000000e+00> : vector<16x16xf32>
    %23 = tpu.matmul %21, %22, %cst {dimension_numbers = #tpu.dot_dimension_numbers<[1], [0], [0], [1], [0, 0, 1, 1], [], []>} : vector<16x16xf32>, vector<16x16xf32>, vector<16x16xf32> -> vector<16x16xf32>
    %24 = arith.mulf %23, %21 : vector<16x16xf32>
    %cst_3 = arith.constant dense<0.000000e+00> : vector<16xf32>
    %25 = vector.multi_reduction <add>, %24, %cst_3 [0] : vector<16x16xf32> to vector<16xf32>
    %26 = vector.shape_cast %25 : vector<16xf32> to vector<1x16xf32>
    %cst_4 = arith.constant dense<0.000000e+00> : vector<1xf32>
    %27 = vector.multi_reduction <add>, %26, %cst_4 [1] : vector<1x16xf32> to vector<1xf32>
    %28 = vector.shape_cast %27 : vector<1xf32> to vector<1x1xf32>
    %29 = vector.shape_cast %28 : vector<1x1xf32> to vector<1x1x1xf32>
    %30 = vector.broadcast %29 : vector<1x1x1xf32> to vector<1x8x128xf32>
    %c0_5 = arith.constant 0 : index
    %c0_6 = arith.constant 0 : index
    %c0_7 = arith.constant 0 : index
    %31 = vector.load %arg3[%c0_5, %c0_6, %c0_7] : memref<1x8x128xf32, #tpu.memory_space<vmem>>, vector<1x8x128xf32>
    tpu.vector_store %arg3[%c0_5, %c0_6, %c0_7], %30 {strides = array<i32>} : memref<1x8x128xf32, #tpu.memory_space<vmem>>, vector<1x8x128xf32>,
    return
  }
  func.func @transform_0(%arg0: i32) -> (i32, i32) {
    %c0_i32 = arith.constant 0 : i32
    %c0_i32_0 = arith.constant 0 : i32
    %c0_i32_1 = arith.constant 0 : i32
    return %c0_i32, %c0_i32_0 : i32, i32
  }
  func.func @transform_1(%arg0: i32) -> (i32, i32) {
    %c0_i32 = arith.constant 0 : i32
    %c0_i32_0 = arith.constant 0 : i32
    return %arg0, %c0_i32 : i32, i32
  }
  func.func @transform_2(%arg0: i32) -> (i32, i32, i32) {
    %c0_i32 = arith.constant 0 : i32
    %c0_i32_0 = arith.constant 0 : i32
    %c0_i32_1 = arith.constant 0 : i32
    return %arg0, %c0_i32, %c0_i32_0 : i32, i32, i32
  }
}

</mosaic_0001>

<llo_original>
// kernel: tpu_custom_call.1
$region0: #{tpu_custom_call.1}
  #allocation0 [shape = 'u32[]', space=smem, size = 0x4, offset = 0x4, fixed_abs, tag = 'smem constant byte address 0x4 - core index']
  #allocation1 [shape = 'u32[144,128]{1,0:T(1,128)}', space=vmem, size = 0x12000, scoped, tag = 'internal scratch']
  %s0 = inlined_call_operand.hbm [shape: f32[16,16], index: 0, kind: input, shape index: {}]
  %s1 = inlined_call_operand.hbm [shape: f32[8,128], index: 1, kind: input, shape index: {}]
  %s2 = inlined_call_operand.hbm [shape: f32[1,8,128], index: 2, kind: output, shape index: {}]
  %s3 = sld [smem:[#allocation0]]
  $region26: #{tpu_custom_call.1} parent=0
    _
  %s5 = ssub.s32 1, %s3
  %s6 = scalar_select 0, %s5, %s3
  $region1: #{tpu_custom_call.1} parent=0
    #allocation2 [shape = 'u8[8192]{0}', space=vmem, size = 0x2000, scoped, tag = 'input window, operand 0, single buffered']
    #allocation3 [shape = 's32[1]{0}', space=sflag, size = 0x4, scoped, tag = 'scoped memory for tpu_custom_call.1']
    #allocation4 [shape = 's32[1]{0}', space=sflag, size = 0x4, scoped, tag = 'scoped memory for tpu_custom_call.1']
    #allocation5 [shape = 'u8[4096]{0}', space=vmem, size = 0x1000, scoped, tag = 'input window, operand 1, single buffered']
    #allocation6 [shape = 's32[1]{0}', space=sflag, size = 0x4, scoped, tag = 'scoped memory for tpu_custom_call.1']
    #allocation7 [shape = 'u8[4096]{0}', space=vmem, size = 0x1000, scoped, tag = 'output window, operand 0, single buffered']
    %7 = vsyncpa [#allocation3], 0
    %8 = vsyncpa [#allocation6], 0
    %9 = vsyncpa [#allocation4], 0
    // Predicated region
    $region2: #{tpu_custom_call.1} parent=1 // pred_check
      _
    $region3: #{tpu_custom_call.1} parent=1 // pred_check_branch
      %11 = sbr.rel (0) target = $region5
    $region4: #{tpu_custom_call.1} parent=1 // pred_region
      %s13 = ssub.s32 256, 256
      %14 = vsyncadd [#allocation3], %s13
      %s15 = sshll.u32 [#allocation2], 4
      %s16 = int_to_ptr.vmem [resolvable:$true] %s15
      %21 = dma.hbm_to_vmem [thread:$0]  %s0, 256, %s16, [#allocation3], 128, 128, 8
    $region5: #{tpu_custom_call.1} parent=1 // pred_fallthru
      _
    // Predicated region
    $region6: #{tpu_custom_call.1} parent=1 // pred_check
      _
    $region7: #{tpu_custom_call.1} parent=1 // pred_check_branch
      %23 = sbr.rel (0) target = $region9
    $region8: #{tpu_custom_call.1} parent=1 // pred_region
      %s25 = ssub.s32 128, 128
      %26 = vsyncadd [#allocation6], %s25
      %s28 = sshll.u32 [#allocation5], 4
      %s29 = int_to_ptr.vmem [resolvable:$true] %s28
      %31 = dma.hbm_to_vmem [thread:$0]  %s1, 128, %s29, [#allocation6]
    $region9: #{tpu_custom_call.1} parent=1 // pred_fallthru
      _
    // Predicated region
    $region10: #{tpu_custom_call.1} parent=1 // pred_check
      _
    $region11: #{tpu_custom_call.1} parent=1 // pred_check_branch
      %33 = sbr.rel (0) target = $region13
    $region12: #{tpu_custom_call.1} parent=1 // pred_region
      %34 = dma.done [#allocation3], 256
    $region13: #{tpu_custom_call.1} parent=1 // pred_fallthru
      _
    // Predicated region
    $region14: #{tpu_custom_call.1} parent=1 // pred_check
      _
    $region15: #{tpu_custom_call.1} parent=1 // pred_check_branch
      %36 = sbr.rel (0) target = $region17
    $region16: #{tpu_custom_call.1} parent=1 // pred_region
      %37 = dma.done [#allocation6], 128
    $region17: #{tpu_custom_call.1} parent=1 // pred_fallthru
      _
    %v38 = vld [vmem:[#allocation5] sm:$0xff]
    %40 = vset.pattern.permute.xlu0 64
    %41 = vperm.xlu0 %40, %v38
    %v42 = vpop.permute.xlu0 %41
    %v44 = vmul.f32 %v42, %v38
    %45 = vset.pattern.permute.xlu0 65
    %46 = vperm.xlu0 %45, %v38
    %v47 = vpop.permute.xlu0 %46
    %v49 = vmul.f32 %v47, %v38
    %51 = vrot.lane.b32.xlu0 %v49, 112
    %v52 = vpop.permute.xlu0 %51
    %v54 = vadd.f32 %v44, %v52
    %55 = vrot.lane.b32.xlu0 %v38, 96
    %v56 = vpop.permute.xlu0 %55
    %v58 = vsub.f32 %v54, %v56
    %59 = vset.pattern.permute.xlu0 66
    %60 = vperm.xlu0 %59, %v38
    %v61 = vpop.permute.xlu0 %60
    %v63 = vmul.f32 %v61, %v38
    %64 = vset.pattern.permute.xlu0 67
    %65 = vperm.xlu0 %64, %v38
    %v66 = vpop.permute.xlu0 %65
    %v68 = vmul.f32 %v66, %v38
    %70 = vrot.lane.b32.xlu0 %v68, 112
    %v71 = vpop.permute.xlu0 %70
    %v73 = vadd.f32 %v63, %v71
    %74 = vrot.lane.b32.xlu0 %v38, 80
    %v75 = vpop.permute.xlu0 %74
    %v77 = vsub.f32 %v73, %v75
    %v78 = vld [vmem:[#allocation2] sm:$0xff]
    %v79 = vld [vmem:[#allocation2 + $0x8] sm:$0xff]
    %vm80 = vcmask 130048
    %v82 = vsel %vm80, %v58, 0
    %v85 = vsel %vm80, %v77, 0
    %87 = vmatprep.subr.mxu0 0.0
    %88 = vmatpush1.msra.mxu0 0.0
    %89 = vmatprep.subr.mxu0 0.0
    %90 = vmatpush1.msra.mxu0 0.0
    %91 = vmatprep.subr.mxu0 0.0
    %92 = vmatpush1.msra.mxu0 0.0
    %93 = vmatprep.subr.mxu0 0.0
    %94 = vmatpush1.msra.mxu0 0.0
    %95 = vmatprep.subr.mxu0 0.0
    %96 = vmatpush1.msra.mxu0 0.0
    %97 = vmatprep.subr.mxu0 0.0
    %98 = vmatpush1.msra.mxu0 0.0
    %99 = vmatprep.subr.mxu0 0.0
    %100 = vmatpush1.msra.mxu0 0.0
    %101 = vmatprep.subr.mxu0 0.0
    %102 = vmatpush1.msra.mxu0 0.0
    %103 = vmatprep.subr.mxu0 0.0
    %104 = vmatpush1.msra.mxu0 0.0
    %105 = vmatprep.subr.mxu0 0.0
    %106 = vmatpush1.msra.mxu0 0.0
    %107 = vmatprep.subr.mxu0 0.0
    %108 = vmatpush1.msra.mxu0 0.0
    %109 = vmatprep.subr.mxu0 0.0
    %110 = vmatpush1.msra.mxu0 0.0
    %111 = vmatprep.subr.mxu0 0.0
    %112 = vmatpush1.msra.mxu0 0.0
    %113 = vmatprep.subr.mxu0 0.0
    %114 = vmatpush1.msra.mxu0 0.0
    %115 = vmatprep.subr.mxu0 0.0
    %116 = vmatpush1.msra.mxu0 %v79
    %117 = vmatprep.subr.mxu0 0.0
    %118 = vmatpush1.msra.mxu0 %v78
    %119 = vmatprep.subr.mxu0 0.0
    %120 = vmatpush2.msra.mxu0 0.0
    %121 = vmatprep.subr.mxu0 0.0
    %122 = vmatpush2.msra.mxu0 0.0
    %123 = vmatprep.subr.mxu0 0.0
    %124 = vmatpush2.msra.mxu0 0.0
    %125 = vmatprep.subr.mxu0 0.0
    %126 = vmatpush2.msra.mxu0 0.0
    %127 = vmatprep.subr.mxu0 0.0
    %128 = vmatpush2.msra.mxu0 0.0
    %129 = vmatprep.subr.mxu0 0.0
    %130 = vmatpush2.msra.mxu0 0.0
    %131 = vmatprep.subr.mxu0 0.0
    %132 = vmatpush2.msra.mxu0 0.0
    %133 = vmatprep.subr.mxu0 0.0
    %134 = vmatpush2.msra.mxu0 0.0
    %135 = vmatprep.subr.mxu0 0.0
    %136 = vmatpush2.msra.mxu0 0.0
    %137 = vmatprep.subr.mxu0 0.0
    %138 = vmatpush2.msra.mxu0 0.0
    %139 = vmatprep.subr.mxu0 0.0
    %140 = vmatpush2.msra.mxu0 0.0
    %141 = vmatprep.subr.mxu0 0.0
    %142 = vmatpush2.msra.mxu0 0.0
    %143 = vmatprep.subr.mxu0 0.0
    %144 = vmatpush2.msra.mxu0 0.0
    %145 = vmatprep.subr.mxu0 0.0
    %146 = vmatpush2.msra.mxu0 0.0
    %147 = vmatprep.subr.mxu0 0.0
    %148 = vmatpush2.msra.mxu0 0.0
    %149 = vmatprep.subr.mxu0 0.0
    %150 = vmatpush2.msra.mxu0 0.0
    %151 = vmatprep.mubr.f32.mxu0 0.0
    %152 = vmatmul.mubr.f32.gmra.mxu0 %v82
    %v153 = vpop.f32.mrf.mxu0
    %v154 = vadd.f32 0.0, %v153
    %v155 = vpop.f32.mrf.mxu0
    %156 = vmatprep.mubr.f32.mxu0 0.0
    %157 = vmatmul.mubr.f32.gmra.mxu0 %v85
    %v158 = vpop.f32.mrf.mxu0
    %v159 = vadd.f32 0.0, %v158
    %v160 = vpop.f32.mrf.mxu0
    %161 = vdwg.mxu0
    %v162 = vmul.f32 %v154, %v58
    %v163 = vmul.f32 %v159, %v77
    %v164 = vsel %vm80, %v162, 0.0
    %v165 = vsel %vm80, %v163, 0.0
    %v166 = vadd.f32 %v164, %v165
    %v167 = vrot.slane %v166, 4
    %v168 = vadd.f32 %v166, %v167
    %v169 = vrot.slane %v168, 2
    %v170 = vadd.f32 %v168, %v169
    %v171 = vrot.slane %v170, 1
    %v172 = vadd.f32 %v170, %v171
    %v173 = vsel %vm80, %v172, 0.0
    %174 = vadd.xlane.f32.xlu0 %v173
    %v175 = vpop.xlane.xlu0 %174
    %176 = vst [vmem:[#allocation7] sm:$0xff] %v175
    // Predicated region
    $region18: #{tpu_custom_call.1} parent=1 // pred_check
      _
    $region19: #{tpu_custom_call.1} parent=1 // pred_check_branch
      %178 = sbr.rel (0) target = $region21
    $region20: #{tpu_custom_call.1} parent=1 // pred_region
      %s180 = ssub.s32 128, 128
      %181 = vsyncadd [#allocation4], %s180
      %s183 = sshll.u32 [#allocation7], 4
      %s184 = int_to_ptr.vmem [resolvable:$true] %s183
      %186 = dma.vmem_to_hbm [thread:$0]  %s184, 128, %s2, [#allocation4]
    $region21: #{tpu_custom_call.1} parent=1 // pred_fallthru
      _
    // Predicated region
    $region22: #{tpu_custom_call.1} parent=1 // pred_check
      _
    $region23: #{tpu_custom_call.1} parent=1 // pred_check_branch
      %188 = sbr.rel (0) target = $region25
    $region24: #{tpu_custom_call.1} parent=1 // pred_region
      %189 = dma.done [#allocation4], 128
    $region25: #{tpu_custom_call.1} parent=1 // pred_fallthru
      _
    %190 = vsyncpa [#allocation3], 1
    %191 = vsyncpa [#allocation6], 1
    %192 = vsyncpa [#allocation4], 1

</llo_original>
